<compile_context>
chip_gen: v6e
topology: v6e:2x2x1
jax: 0.10.0
libtpu: 0.0.40
codegen_flags: <defaults>
</compile_context>

<pallas_src>
import functools
import math

import jax
import jax.numpy as jnp
from jax import lax
from jax.experimental import pallas as pl
from jax.experimental.pallas import tpu as pltpu

_GROUP = 8  # tokens packed per dense store (one f32 vreg worth of sublanes)


def _embed_kernel(ids_ref, lut_ref, out_ref, *, tok_block, scale):
    """ids_ref: SMEM int32 (n_pad,) scalar-prefetched token ids.
    lut_ref:  VMEM (vocab, d_model) resident embedding table.
    out_ref:  VMEM (tok_block, d_model) output tile for this grid step."""
    blk_base = pl.program_id(0) * tok_block
    n_groups = tok_block // _GROUP

    def body(g, carry):
        gbase = pl.multiple_of(g * _GROUP, _GROUP)
        # Gather 8 LUT rows (dynamic single-row slices from the VMEM-resident LUT).
        rows = [
            lut_ref[pl.ds(ids_ref[blk_base + gbase + r], 1), :]
            for r in range(_GROUP)
        ]
        tile = jnp.concatenate(rows, axis=0)  # (8, d_model) packed tile
        # One dense f32 multiply for the whole packed tile, then a single
        # unmasked (8, d_model) store into the output tile.
        tile = (tile.astype(jnp.float32) * scale).astype(out_ref.dtype)
        out_ref[pl.ds(gbase, _GROUP), :] = tile
        return carry

    lax.fori_loop(0, n_groups, body, 0, unroll=min(8, n_groups))


def make_embedding_fn(d_model: int):
    scale = float(math.sqrt(d_model))

    def embedding(ids, lut):
        """ids: int array (any leading shape); lut: (vocab, d_model).
        Returns ids.shape + (d_model,) in lut.dtype."""
        vocab, dm = lut.shape
        assert dm == d_model, f"lut last dim {dm} != d_model {d_model}"
        lead = ids.shape
        n_tok = 1
        for s in lead:
            n_tok *= int(s)

        itemsize = jnp.dtype(lut.dtype).itemsize
        row_bytes = d_model * itemsize
        lut_bytes = vocab * row_bytes

        # Generation-aware VMEM budget: ~102 MiB on v5e/v6e (128 MiB physical),
        # ~48 MiB on v7x (64 MiB physical).
        try:
            vmem_cap = int(pltpu.get_tpu_info().vmem_capacity_bytes)
        except Exception:
            vmem_cap = 64 * 1024 * 1024  # conservative fallback: assume v7x
        vmem_budget = min(int(vmem_cap * 0.8), vmem_cap - 16 * 1024 * 1024)

        # Token block: target ~1 MiB output tile per grid step (HBM writeback
        # roofline), a multiple of _GROUP, bounded by what fits next to the
        # (double-buffered) resident LUT, and a divisor of the 8-aligned token
        # count so every grid block is uniform.
        headroom = 1 << 20
        target_tile_bytes = 1 << 20
        tb = max(_GROUP, min(1024, (target_tile_bytes // row_bytes) // _GROUP * _GROUP))
        avail_out = vmem_budget - 2 * lut_bytes - headroom
        tb_cap = max(_GROUP, (avail_out // (2 * row_bytes)) // _GROUP * _GROUP)
        tb = min(tb, tb_cap)

        n_pad = pl.cdiv(n_tok, _GROUP) * _GROUP  # 8-aligned token count
        tb = min(tb, n_pad)
        while n_pad % tb != 0:  # terminates at tb == _GROUP
            tb -= _GROUP
        num_blocks = n_pad // tb

        vmem_needed = 2 * lut_bytes + 2 * tb * row_bytes + headroom
        if vmem_needed > vmem_budget:
            # TODO(synk): HBM manual-DMA row-gather fallback for LUTs > VMEM budget.
            raise NotImplementedError(
                "Embedding table too large for the VMEM-resident path on this TPU."
            )
        vmem_limit = int(min(vmem_budget, max(vmem_needed, 32 * 1024 * 1024)))

        # Clamp OOB ids (PyTorch would raise) and pad the flat id vector so the
        # last grid block's SMEM reads stay in bounds.
        flat_ids = jnp.clip(ids.reshape(n_tok).astype(jnp.int32), 0, vocab - 1)
        if n_pad != n_tok:
            flat_ids = jnp.pad(flat_ids, (0, n_pad - n_tok))

        kernel = functools.partial(_embed_kernel, tok_block=tb, scale=scale)

        out_flat = pl.pallas_call(
            kernel,
            # Output declared at the true token count; the ragged tail of the
            # last block (< 8 rows) is masked off on writeback, so no XLA slice
            # / extra HBM round trip is needed.
            out_shape=jax.ShapeDtypeStruct((n_tok, d_model), lut.dtype),
            grid_spec=pltpu.PrefetchScalarGridSpec(
                num_scalar_prefetch=1,  # flat token ids -> SMEM
                grid=(num_blocks,),
                in_specs=[
                    # Whole LUT resident in VMEM; constant block index -> fetched once.
                    pl.BlockSpec((vocab, d_model), lambda i, ids_sref: (0, 0)),
                ],
                out_specs=pl.BlockSpec((tb, d_model), lambda i, ids_sref: (i, 0)),
            ),
            compiler_params=pltpu.CompilerParams(
                dimension_semantics=("parallel",),  # token blocks are independent
                vmem_limit_bytes=vmem_limit,
            ),
        )(flat_ids, lut)

        return out_flat.reshape(*lead, d_model)

    return embedding


if __name__ == "__main__":
    # Small, deterministic setup consistent with the module's forward.
    d_model = 32
    vocab = 64
    batch, seq = 2, 8

    key = jax.random.PRNGKey(0)
    k_lut, k_ids = jax.random.split(key)

    # nn.Embedding weight ~ N(0, 1); deterministic synthetic init here.
    lut = jax.random.normal(k_lut, (vocab, d_model), dtype=jnp.float32)
    ids = jax.random.randint(k_ids, (batch, seq), 0, vocab, dtype=jnp.int32)

    embedding = make_embedding_fn(d_model)
    y = jax.block_until_ready(embedding(ids, lut))

    # Reference check (plain JAX gather) to make sure semantics match.
    y_ref = lut[ids] * math.sqrt(d_model)
    assert y.shape == (batch, seq, d_model)
    assert jnp.allclose(y, y_ref, atol=1e-6), "mismatch vs reference"

    print("KERNEL_OK")
</pallas_src>

<mosaic_0001>
module attributes {stable_mosaic.version = 11 : i64} {
  func.func @_embed_kernel(%arg0: i32, %arg1: memref<16xi32, #tpu.memory_space<smem>>, %arg2: memref<64x32xf32, #tpu.memory_space<vmem>>, %arg3: memref<16x32xf32, #tpu.memory_space<vmem>>) attributes {dimension_semantics = [#tpu.dimension_semantics<parallel>], iteration_bounds = array<i64: 1>, scalar_prefetch = 1 : i64, scratch_operands = 0 : i64, tpu.core_type = #tpu.core_type<tc>, window_params = [{pipeline_mode = #tpu.pipeline_mode<synchronous>, transform_indices = @transform_0, window_bounds = array<i64: 64, 32>}, {transform_indices = @transform_1, window_bounds = array<i64: 16, 32>}]} {
    %c16_i32 = arith.constant 16 : i32
    %0 = arith.muli %arg0, %c16_i32 : i32
    %c0_i32 = arith.constant 0 : i32
    %c8_i32 = arith.constant 8 : i32
    %1 = arith.muli %c0_i32, %c8_i32 : i32
    %2 = tpu.assume_multiple %1, 8 : i32
    %3 = arith.addi %0, %2 : i32
    %c0_i32_0 = arith.constant 0 : i32
    %4 = arith.addi %3, %c0_i32_0 : i32
    %5 = arith.index_cast %4 : i32 to index
    %6 = memref.load %arg1[%5] : memref<16xi32, #tpu.memory_space<smem>>
    %7 = arith.index_cast %6 : i32 to index
    %c0 = arith.constant 0 : index
    %8 = vector.load %arg2[%7, %c0] : memref<64x32xf32, #tpu.memory_space<vmem>>, vector<1x32xf32>
    %9 = arith.addi %0, %2 : i32
    %c1_i32 = arith.constant 1 : i32
    %10 = arith.addi %9, %c1_i32 : i32
    %11 = arith.index_cast %10 : i32 to index
    %12 = memref.load %arg1[%11] : memref<16xi32, #tpu.memory_space<smem>>
    %13 = arith.index_cast %12 : i32 to index
    %c0_1 = arith.constant 0 : index
    %14 = vector.load %arg2[%13, %c0_1] : memref<64x32xf32, #tpu.memory_space<vmem>>, vector<1x32xf32>
    %15 = arith.addi %0, %2 : i32
    %c2_i32 = arith.constant 2 : i32
    %16 = arith.addi %15, %c2_i32 : i32
    %17 = arith.index_cast %16 : i32 to index
    %18 = memref.load %arg1[%17] : memref<16xi32, #tpu.memory_space<smem>>
    %19 = arith.index_cast %18 : i32 to index
    %c0_2 = arith.constant 0 : index
    %20 = vector.load %arg2[%19, %c0_2] : memref<64x32xf32, #tpu.memory_space<vmem>>, vector<1x32xf32>
    %21 = arith.addi %0, %2 : i32
    %c3_i32 = arith.constant 3 : i32
    %22 = arith.addi %21, %c3_i32 : i32
    %23 = arith.index_cast %22 : i32 to index
    %24 = memref.load %arg1[%23] : memref<16xi32, #tpu.memory_space<smem>>
    %25 = arith.index_cast %24 : i32 to index
    %c0_3 = arith.constant 0 : index
    %26 = vector.load %arg2[%25, %c0_3] : memref<64x32xf32, #tpu.memory_space<vmem>>, vector<1x32xf32>
    %27 = arith.addi %0, %2 : i32
    %c4_i32 = arith.constant 4 : i32
    %28 = arith.addi %27, %c4_i32 : i32
    %29 = arith.index_cast %28 : i32 to index
    %30 = memref.load %arg1[%29] : memref<16xi32, #tpu.memory_space<smem>>
    %31 = arith.index_cast %30 : i32 to index
    %c0_4 = arith.constant 0 : index
    %32 = vector.load %arg2[%31, %c0_4] : memref<64x32xf32, #tpu.memory_space<vmem>>, vector<1x32xf32>
    %33 = arith.addi %0, %2 : i32
    %c5_i32 = arith.constant 5 : i32
    %34 = arith.addi %33, %c5_i32 : i32
    %35 = arith.index_cast %34 : i32 to index
    %36 = memref.load %arg1[%35] : memref<16xi32, #tpu.memory_space<smem>>
    %37 = arith.index_cast %36 : i32 to index
    %c0_5 = arith.constant 0 : index
    %38 = vector.load %arg2[%37, %c0_5] : memref<64x32xf32, #tpu.memory_space<vmem>>, vector<1x32xf32>
    %39 = arith.addi %0, %2 : i32
    %c6_i32 = arith.constant 6 : i32
    %40 = arith.addi %39, %c6_i32 : i32
    %41 = arith.index_cast %40 : i32 to index
    %42 = memref.load %arg1[%41] : memref<16xi32, #tpu.memory_space<smem>>
    %43 = arith.index_cast %42 : i32 to index
    %c0_6 = arith.constant 0 : index
    %44 = vector.load %arg2[%43, %c0_6] : memref<64x32xf32, #tpu.memory_space<vmem>>, vector<1x32xf32>
    %45 = arith.addi %0, %2 : i32
    %c7_i32 = arith.constant 7 : i32
    %46 = arith.addi %45, %c7_i32 : i32
    %47 = arith.index_cast %46 : i32 to index
    %48 = memref.load %arg1[%47] : memref<16xi32, #tpu.memory_space<smem>>
    %49 = arith.index_cast %48 : i32 to index
    %c0_7 = arith.constant 0 : index
    %50 = vector.load %arg2[%49, %c0_7] : memref<64x32xf32, #tpu.memory_space<vmem>>, vector<1x32xf32>
    %51 = tpu.concatenate %8, %14, %20, %26, %32, %38, %44, %50 in 0 : vector<1x32xf32>, vector<1x32xf32>, vector<1x32xf32>, vector<1x32xf32>, vector<1x32xf32>, vector<1x32xf32>, vector<1x32xf32>, vector<1x32xf32> -> vector<8x32xf32>
    %cst = arith.constant 5.65685415 : f32
    %52 = vector.broadcast %cst : f32 to vector<8x32xf32>
    %53 = arith.mulf %51, %52 : vector<8x32xf32>
    %54 = arith.index_cast %2 : i32 to index
    %c0_8 = arith.constant 0 : index
    %55 = vector.load %arg3[%54, %c0_8] : memref<16x32xf32, #tpu.memory_space<vmem>>, vector<8x32xf32>
    tpu.vector_store %arg3[%54, %c0_8], %53 {strides = array<i32>} : memref<16x32xf32, #tpu.memory_space<vmem>>, vector<8x32xf32>,
    %c1_i32_9 = arith.constant 1 : i32
    %c8_i32_10 = arith.constant 8 : i32
    %56 = arith.muli %c1_i32_9, %c8_i32_10 : i32
    %57 = tpu.assume_multiple %56, 8 : i32
    %58 = arith.addi %0, %57 : i32
    %c0_i32_11 = arith.constant 0 : i32
    %59 = arith.addi %58, %c0_i32_11 : i32
    %60 = arith.index_cast %59 : i32 to index
    %61 = memref.load %arg1[%60] : memref<16xi32, #tpu.memory_space<smem>>
    %62 = arith.index_cast %61 : i32 to index
    %c0_12 = arith.constant 0 : index
    %63 = vector.load %arg2[%62, %c0_12] : memref<64x32xf32, #tpu.memory_space<vmem>>, vector<1x32xf32>
    %64 = arith.addi %0, %57 : i32
    %c1_i32_13 = arith.constant 1 : i32
    %65 = arith.addi %64, %c1_i32_13 : i32
    %66 = arith.index_cast %65 : i32 to index
    %67 = memref.load %arg1[%66] : memref<16xi32, #tpu.memory_space<smem>>
    %68 = arith.index_cast %67 : i32 to index
    %c0_14 = arith.constant 0 : index
    %69 = vector.load %arg2[%68, %c0_14] : memref<64x32xf32, #tpu.memory_space<vmem>>, vector<1x32xf32>
    %70 = arith.addi %0, %57 : i32
    %c2_i32_15 = arith.constant 2 : i32
    %71 = arith.addi %70, %c2_i32_15 : i32
    %72 = arith.index_cast %71 : i32 to index
    %73 = memref.load %arg1[%72] : memref<16xi32, #tpu.memory_space<smem>>
    %74 = arith.index_cast %73 : i32 to index
    %c0_16 = arith.constant 0 : index
    %75 = vector.load %arg2[%74, %c0_16] : memref<64x32xf32, #tpu.memory_space<vmem>>, vector<1x32xf32>
    %76 = arith.addi %0, %57 : i32
    %c3_i32_17 = arith.constant 3 : i32
    %77 = arith.addi %76, %c3_i32_17 : i32
    %78 = arith.index_cast %77 : i32 to index
    %79 = memref.load %arg1[%78] : memref<16xi32, #tpu.memory_space<smem>>
    %80 = arith.index_cast %79 : i32 to index
    %c0_18 = arith.constant 0 : index
    %81 = vector.load %arg2[%80, %c0_18] : memref<64x32xf32, #tpu.memory_space<vmem>>, vector<1x32xf32>
    %82 = arith.addi %0, %57 : i32
    %c4_i32_19 = arith.constant 4 : i32
    %83 = arith.addi %82, %c4_i32_19 : i32
    %84 = arith.index_cast %83 : i32 to index
    %85 = memref.load %arg1[%84] : memref<16xi32, #tpu.memory_space<smem>>
    %86 = arith.index_cast %85 : i32 to index
    %c0_20 = arith.constant 0 : index
    %87 = vector.load %arg2[%86, %c0_20] : memref<64x32xf32, #tpu.memory_space<vmem>>, vector<1x32xf32>
    %88 = arith.addi %0, %57 : i32
    %c5_i32_21 = arith.constant 5 : i32
    %89 = arith.addi %88, %c5_i32_21 : i32
    %90 = arith.index_cast %89 : i32 to index
    %91 = memref.load %arg1[%90] : memref<16xi32, #tpu.memory_space<smem>>
    %92 = arith.index_cast %91 : i32 to index
    %c0_22 = arith.constant 0 : index
    %93 = vector.load %arg2[%92, %c0_22] : memref<64x32xf32, #tpu.memory_space<vmem>>, vector<1x32xf32>
    %94 = arith.addi %0, %57 : i32
    %c6_i32_23 = arith.constant 6 : i32
    %95 = arith.addi %94, %c6_i32_23 : i32
    %96 = arith.index_cast %95 : i32 to index
    %97 = memref.load %arg1[%96] : memref<16xi32, #tpu.memory_space<smem>>
    %98 = arith.index_cast %97 : i32 to index
    %c0_24 = arith.constant 0 : index
    %99 = vector.load %arg2[%98, %c0_24] : memref<64x32xf32, #tpu.memory_space<vmem>>, vector<1x32xf32>
    %100 = arith.addi %0, %57 : i32
    %c7_i32_25 = arith.constant 7 : i32
    %101 = arith.addi %100, %c7_i32_25 : i32
    %102 = arith.index_cast %101 : i32 to index
    %103 = memref.load %arg1[%102] : memref<16xi32, #tpu.memory_space<smem>>
    %104 = arith.index_cast %103 : i32 to index
    %c0_26 = arith.constant 0 : index
    %105 = vector.load %arg2[%104, %c0_26] : memref<64x32xf32, #tpu.memory_space<vmem>>, vector<1x32xf32>
    %106 = tpu.concatenate %63, %69, %75, %81, %87, %93, %99, %105 in 0 : vector<1x32xf32>, vector<1x32xf32>, vector<1x32xf32>, vector<1x32xf32>, vector<1x32xf32>, vector<1x32xf32>, vector<1x32xf32>, vector<1x32xf32> -> vector<8x32xf32>
    %cst_27 = arith.constant 5.65685415 : f32
    %107 = vector.broadcast %cst_27 : f32 to vector<8x32xf32>
    %108 = arith.mulf %106, %107 : vector<8x32xf32>
    %109 = arith.index_cast %57 : i32 to index
    %c0_28 = arith.constant 0 : index
    %110 = vector.load %arg3[%109, %c0_28] : memref<16x32xf32, #tpu.memory_space<vmem>>, vector<8x32xf32>
    tpu.vector_store %arg3[%109, %c0_28], %108 {strides = array<i32>} : memref<16x32xf32, #tpu.memory_space<vmem>>, vector<8x32xf32>,
    %c2_i32_29 = arith.constant 2 : i32
    return
  }
  func.func @transform_0(%arg0: i32, %arg1: memref<16xi32, #tpu.memory_space<smem>>) -> (i32, i32) {
    %c0_i32 = arith.constant 0 : i32
    %c0_i32_0 = arith.constant 0 : i32
    %c0_i32_1 = arith.constant 0 : i32
    return %c0_i32, %c0_i32_0 : i32, i32
  }
  func.func @transform_1(%arg0: i32, %arg1: memref<16xi32, #tpu.memory_space<smem>>) -> (i32, i32) {
    %c0_i32 = arith.constant 0 : i32
    %c0_i32_0 = arith.constant 0 : i32
    return %arg0, %c0_i32 : i32, i32
  }
}

</mosaic_0001>

<llo_original>
// kernel: tpu_custom_call.1
$region0: #{tpu_custom_call.1}
  #allocation0 [shape = 'u32[]', space=smem, size = 0x4, offset = 0x4, fixed_abs, tag = 'smem constant byte address 0x4 - core index']
  #allocation1 [shape = 'u32[144,128]{1,0:T(1,128)}', space=vmem, size = 0x12000, scoped, tag = 'internal scratch']
  #allocation2 [shape = 's32[1]{0}', space=sflag, size = 0x4, scoped, tag = 'scoped memory for tpu_custom_call.1']
  #allocation3 [shape = 'u8[512]{0}', space=smem, size = 0x200, scoped, tag = 'prefetched SMEM operand 0']
  %s0 = inlined_call_operand.vmem [shape: s32[16], index: 0, kind: input, shape index: {}]
  %s1 = inlined_call_operand.vmem [shape: f32[64,32], index: 1, kind: input, shape index: {}]
  %s2 = inlined_call_operand.hbm [shape: f32[16,32], index: 2, kind: output, shape index: {}]
  %s3 = sld [smem:[#allocation0]]
  $region14: #{tpu_custom_call.1} parent=0
    _
  %s5 = ssub.s32 1, %s3
  %s6 = scalar_select 0, %s5, %s3
  %s7 = sshll.u32 %s0, 4
  %s8 = int_to_ptr.vmem [resolvable:$true] %s7
  %10 = dma.vmem_to_smem %s8, 16, [#allocation3], [#allocation2]
  %11 = dma.done [#allocation2], 16
  %12 = sfence
  $region1: #{tpu_custom_call.1} parent=0
    #allocation4 [shape = 'u8[8192]{0}', space=vmem, size = 0x2000, scoped, tag = 'output window, operand 0, single buffered']
    #allocation5 [shape = 's32[1]{0}', space=sflag, size = 0x4, scoped, tag = 'scoped memory for tpu_custom_call.1']
    %13 = vsyncpa [#allocation5], 0
    // Predicated region
    $region2: #{tpu_custom_call.1} parent=1 // pred_check
      _
    $region3: #{tpu_custom_call.1} parent=1 // pred_check_branch
      %15 = sbr.rel (0) target = $region5
    $region4: #{tpu_custom_call.1} parent=1 // pred_region
      _
    $region5: #{tpu_custom_call.1} parent=1 // pred_fallthru
      _
    %s16 = smul.u32 0, 16
    %s17 = sadd.s32 %s16, 0
    %s18 = sld [smem:[#allocation3 + %s17]]
    %s19 = scalar_lea.vmem %s1, %s18
    %v20 = vld [vmem:[%s19] sm:$0x1]
    %s21 = sadd.s32 %s17, 1
    %s22 = sld [smem:[#allocation3 + %s21]]
    %s23 = scalar_lea.vmem %s1, %s22
    %v24 = vld [vmem:[%s23] sm:$0x1]
    %s25 = sadd.s32 %s17, 2
    %s26 = sld [smem:[#allocation3 + %s25]]
    %s27 = scalar_lea.vmem %s1, %s26
    %v28 = vld [vmem:[%s27] sm:$0x1]
    %s29 = sadd.s32 %s17, 3
    %s30 = sld [smem:[#allocation3 + %s29]]
    %s31 = scalar_lea.vmem %s1, %s30
    %v32 = vld [vmem:[%s31] sm:$0x1]
    %s33 = sadd.s32 %s17, 4
    %s34 = sld [smem:[#allocation3 + %s33]]
    %s35 = scalar_lea.vmem %s1, %s34
    %v36 = vld [vmem:[%s35] sm:$0x1]
    %s37 = sadd.s32 %s17, 5
    %s38 = sld [smem:[#allocation3 + %s37]]
    %s39 = scalar_lea.vmem %s1, %s38
    %v40 = vld [vmem:[%s39] sm:$0x1]
    %s41 = sadd.s32 %s17, 6
    %s42 = sld [smem:[#allocation3 + %s41]]
    %s43 = scalar_lea.vmem %s1, %s42
    %v44 = vld [vmem:[%s43] sm:$0x1]
    %s45 = sadd.s32 %s17, 7
    %s46 = sld [smem:[#allocation3 + %s45]]
    %s47 = scalar_lea.vmem %s1, %s46
    %v48 = vld [vmem:[%s47] sm:$0x1]
    %v50 = vrot.slane %v24, 7
    %v53 = vrot.slane %v28, 6
    %v56 = vrot.slane %v32, 5
    %v59 = vrot.slane %v36, 4
    %v62 = vrot.slane %v40, 3
    %v65 = vrot.slane %v44, 2
    %v68 = vrot.slane %v48, 1
    %vm70 = vcmask 1040384
    %v71 = vsel %vm70, %v20, %v50
    %vm72 = vcmask 1041408
    %v73 = vsel %vm72, %v71, %v53
    %vm74 = vcmask 1042432
    %v75 = vsel %vm74, %v73, %v56
    %vm76 = vcmask 1043456
    %v77 = vsel %vm76, %v75, %v59
    %vm78 = vcmask 1044480
    %v79 = vsel %vm78, %v77, %v62
    %vm80 = vcmask 1045504
    %v81 = vsel %vm80, %v79, %v65
    %vm82 = vcmask 1046528
    %v83 = vsel %vm82, %v81, %v68
    %v84 = vmul.f32 %v83, 5.656854
    %vm85 = vcmask 261120
    %86 = vst.msk [vmem:[#allocation4] sm:$0xff] %vm85, %v84
    %s87 = sadd.s32 %s16, 8
    %s88 = sld [smem:[#allocation3 + %s87]]
    %s89 = scalar_lea.vmem %s1, %s88
    %v90 = vld [vmem:[%s89] sm:$0x1]
    %s91 = sadd.s32 %s87, 1
    %s92 = sld [smem:[#allocation3 + %s91]]
    %s93 = scalar_lea.vmem %s1, %s92
    %v94 = vld [vmem:[%s93] sm:$0x1]
    %s95 = sadd.s32 %s87, 2
    %s96 = sld [smem:[#allocation3 + %s95]]
    %s97 = scalar_lea.vmem %s1, %s96
    %v98 = vld [vmem:[%s97] sm:$0x1]
    %s99 = sadd.s32 %s87, 3
    %s100 = sld [smem:[#allocation3 + %s99]]
    %s101 = scalar_lea.vmem %s1, %s100
    %v102 = vld [vmem:[%s101] sm:$0x1]
    %s103 = sadd.s32 %s87, 4
    %s104 = sld [smem:[#allocation3 + %s103]]
    %s105 = scalar_lea.vmem %s1, %s104
    %v106 = vld [vmem:[%s105] sm:$0x1]
    %s107 = sadd.s32 %s87, 5
    %s108 = sld [smem:[#allocation3 + %s107]]
    %s109 = scalar_lea.vmem %s1, %s108
    %v110 = vld [vmem:[%s109] sm:$0x1]
    %s111 = sadd.s32 %s87, 6
    %s112 = sld [smem:[#allocation3 + %s111]]
    %s113 = scalar_lea.vmem %s1, %s112
    %v114 = vld [vmem:[%s113] sm:$0x1]
    %s115 = sadd.s32 %s87, 7
    %s116 = sld [smem:[#allocation3 + %s115]]
    %s117 = scalar_lea.vmem %s1, %s116
    %v118 = vld [vmem:[%s117] sm:$0x1]
    %v120 = vrot.slane %v94, 7
    %v123 = vrot.slane %v98, 6
    %v126 = vrot.slane %v102, 5
    %v129 = vrot.slane %v106, 4
    %v132 = vrot.slane %v110, 3
    %v135 = vrot.slane %v114, 2
    %v138 = vrot.slane %v118, 1
    %v140 = vsel %vm70, %v90, %v120
    %v141 = vsel %vm72, %v140, %v123
    %v142 = vsel %vm74, %v141, %v126
    %v143 = vsel %vm76, %v142, %v129
    %v144 = vsel %vm78, %v143, %v132
    %v145 = vsel %vm80, %v144, %v135
    %v146 = vsel %vm82, %v145, %v138
    %v147 = vmul.f32 %v146, 5.656854
    %s148 = scalar_lea.vmem [#allocation4], 8
    %149 = vst.msk [vmem:[%s148] sm:$0xff] %vm85, %v147
    // Predicated region
    $region6: #{tpu_custom_call.1} parent=1 // pred_check
      _
    $region7: #{tpu_custom_call.1} parent=1 // pred_check_branch
      %151 = sbr.rel (0) target = $region9
    $region8: #{tpu_custom_call.1} parent=1 // pred_region
      %s153 = ssub.s32 256, 256
      %154 = vsyncadd [#allocation5], %s153
      %s155 = sshll.u32 [#allocation4], 4
      %s156 = int_to_ptr.vmem [resolvable:$true] %s155
      %161 = dma.vmem_to_hbm [thread:$0]  %s156, 256, %s2, [#allocation5], 128, 128, 8
    $region9: #{tpu_custom_call.1} parent=1 // pred_fallthru
      _
    // Predicated region
    $region10: #{tpu_custom_call.1} parent=1 // pred_check
      _
    $region11: #{tpu_custom_call.1} parent=1 // pred_check_branch
      %163 = sbr.rel (0) target = $region13
    $region12: #{tpu_custom_call.1} parent=1 // pred_region
      %164 = dma.done [#allocation5], 256
    $region13: #{tpu_custom_call.1} parent=1 // pred_fallthru
      _
    %165 = vsyncpa [#allocation5], 1

</llo_original>
